<compile_context>
chip_gen: v5e
topology: v5e:2x2
jax: 0.10.0
libtpu: 0.0.40
codegen_flags: <defaults>
</compile_context>

<pallas_src>
import functools

import jax
import jax.numpy as jnp
from jax import lax
from jax.experimental import pallas as pl
from jax.experimental.pallas import tpu as pltpu


def _round_up(x, m):
    return ((x + m - 1) // m) * m


def _clone_classifier_kernel(e1_ref, e2_ref, w1_ref, bw_ref, out_ref):
    """One batch tile: out(1,TM) = row1 of bw(8,H) @ relu(x @ w1 + b1)^T."""
    cd = w1_ref.dtype
    # Assemble the concatenated (TM, 2E) MXU operand in VMEM/registers; casting
    # here keeps HBM traffic to the raw f32 embeddings (no pre-materialized copy).
    x = jnp.concatenate([e1_ref[...].astype(cd), e2_ref[...].astype(cd)], axis=1)
    # Layer 1: single K=2E dot on the MXU, f32 accumulation.
    h = jnp.dot(x, w1_ref[...], preferred_element_type=jnp.float32)  # (TM, H) f32
    bw = bw_ref[...]                         # (8, H) f32: row0 = b1, row1 = w2
    # Bias + ReLU on the VPU (f32).  Dropout(0.2) is identity at inference.
    # TODO(synk): training-mode dropout mask not implemented (eval module).
    h = jnp.maximum(h + bw[0:1, :], 0.0)
    # Layer 2 (H -> 1): contract H of bw against H of h -> (8, TM).  Row 1 is
    # w2 . h_t and is already lane-dense; other rows are discarded filler so the
    # MXU never sees a size-1 operand.  Full-lane stores instead of TM masked
    # single-lane stores.
    logits8 = lax.dot_general(bw, h, (((1,), (1,)), ((), ())),
                              preferred_element_type=jnp.float32)    # (8, TM)
    out_ref[...] = logits8[1:2, :]                                    # (1, TM)


@functools.partial(jax.jit, static_argnames=("tm", "compute_dtype"))
def clone_classifier(emb1, emb2, w1, b1, w2, b2, *, tm=2048,
                     compute_dtype=jnp.bfloat16):
    """Forward pass of CloneClassifier (eval mode).

    Args:
      emb1, emb2: (B, E) float32 embeddings.
      w1: (2E, H) float32 (pre-transposed: in_features x out_features).
      b1: (H,) float32.   w2: (H, 1) float32.   b2: (1,) float32.
      tm: batch tile size (clamped for small B; rounded to a multiple of 128).
      compute_dtype: operand dtype for the layer-1 MXU dot (accumulation is
        always f32).  bfloat16 (default) is MXU-native; float32 gives exact
        parity with the f32 PyTorch module.
    Returns:
      (B, 1) float32 logits.
    """
    B, E = emb1.shape
    H = w1.shape[1]
    two_e = 2 * E

    # ---- batch tile selection ---------------------------------------------
    # Lane-dense output + bf16 sublane packing want TM % 128 == 0; don't pad
    # tiny batches up to the full default tile.
    tm = min(tm, _round_up(B, 128))
    # Aim for >= 2 grid steps on non-tiny batches so the "parallel" batch axis
    # can span both v7x TensorCores (no-op on single-TC v5e/v6e).
    if B > 128:
        tm = min(tm, _round_up(pl.cdiv(B, 2), 128))
    tm = max(128, _round_up(tm, 128))
    num_tiles = pl.cdiv(B, tm)
    b_pad = num_tiles * tm   # input tail blocks are clipped by Pallas; padded
                             # output lanes are sliced off below.

    # ---- resident parameters ------------------------------------------------
    w1c = w1.astype(compute_dtype)                      # (2E, H), one-time cast
    # Merge b1 and w2 into one resident (8, H) f32 block (row0=b1, row1=w2,
    # rows 2..7 zero): one BlockSpec/DMA instead of two, and an 8-row LHS for
    # the layer-2 matmul.
    bw = jnp.zeros((8, H), jnp.float32)
    bw = bw.at[0, :].set(b1.astype(jnp.float32))
    bw = bw.at[1, :].set(w2.reshape(H).astype(jnp.float32))

    # ---- scoped-VMEM budget --------------------------------------------------
    cd_bytes = jnp.dtype(compute_dtype).itemsize
    vmem_est = (4 * tm * E * 4               # emb1/emb2 tiles, double-buffered, f32
                + 2 * two_e * H * cd_bytes   # resident w1 (<= 2 buffers)
                + tm * two_e * cd_bytes      # in-kernel concatenated operand
                + 3 * tm * H * 4             # h + ReLU / transposed-RHS temps
                + 8 * tm * 4                 # (8, TM) layer-2 result
                + (4 << 20))                 # Mosaic internal scratch headroom
    # v5e's default scoped-VMEM limit is 16 MiB; raise it so large tiles fit.
    # (Keep tm <= 2048 on v7x: only 64 MiB of VMEM per TensorCore.)
    vmem_limit = int(min(max(vmem_est, 32 << 20), 96 << 20))

    out = pl.pallas_call(
        _clone_classifier_kernel,
        out_shape=jax.ShapeDtypeStruct((1, b_pad), jnp.float32),
        grid=(num_tiles,),
        in_specs=[
            pl.BlockSpec((tm, E), lambda i: (i, 0)),     # emb1 tile (pipelined)
            pl.BlockSpec((tm, E), lambda i: (i, 0)),     # emb2 tile (pipelined)
            pl.BlockSpec((two_e, H), lambda i: (0, 0)),  # w1: resident in VMEM
            pl.BlockSpec((8, H), lambda i: (0, 0)),      # merged b1/w2: resident
        ],
        out_specs=pl.BlockSpec((1, tm), lambda i: (0, i)),  # lane-dense logits
        compiler_params=pltpu.CompilerParams(
            dimension_semantics=("parallel",),           # megacore on v7x
            vmem_limit_bytes=vmem_limit),
    )(emb1, emb2, w1c, bw)

    # b2 added here (avoids a padded (1,1) VMEM block); reshape the lane-dense
    # (1, b_pad) row back to (B, 1) and drop padded lanes.
    return out[0, :B].reshape(B, 1) + b2.reshape(1, 1)


def reference(emb1, emb2, w1, b1, w2, b2):
    combined = jnp.concatenate([emb1, emb2], axis=1)
    h = jnp.maximum(
        jnp.dot(combined, w1, precision=lax.Precision.HIGHEST) + b1, 0.0)
    return jnp.dot(h, w2, precision=lax.Precision.HIGHEST) + b2


if __name__ == "__main__":
    # Small shapes consistent with the module: batch=2, embed_dim=32
    # (hidden=512 and the single-logit head are fixed by the module).
    B, E, H = 2, 32, 512

    key = jax.random.PRNGKey(0)
    k1, k2, k3, k4, k5, k6 = jax.random.split(key, 6)
    emb1 = jax.random.normal(k1, (B, E), dtype=jnp.float32)
    emb2 = jax.random.normal(k2, (B, E), dtype=jnp.float32)
    # Deterministic synthetic parameters (not loaded from a checkpoint).
    w1 = jax.random.normal(k3, (2 * E, H), dtype=jnp.float32) * 0.02
    b1 = jax.random.normal(k4, (H,), dtype=jnp.float32) * 0.02
    w2 = jax.random.normal(k5, (H, 1), dtype=jnp.float32) * 0.02
    b2 = jax.random.normal(k6, (1,), dtype=jnp.float32) * 0.02

    ref = reference(emb1, emb2, w1, b1, w2, b2)

    # Exact-parity path (f32 MXU operands).
    out_f32 = jax.block_until_ready(
        clone_classifier(emb1, emb2, w1, b1, w2, b2, compute_dtype=jnp.float32))
    assert out_f32.shape == (B, 1), out_f32.shape
    assert jnp.allclose(out_f32, ref, atol=1e-4, rtol=1e-3), (out_f32, ref)

    # Default fast path (bf16 MXU operands, f32 accumulate / epilogue).
    out_bf16 = jax.block_until_ready(
        clone_classifier(emb1, emb2, w1, b1, w2, b2))
    assert out_bf16.shape == (B, 1), out_bf16.shape
    assert jnp.allclose(out_bf16, ref, atol=2e-2, rtol=2e-2), (out_bf16, ref)

    print("KERNEL_OK")
</pallas_src>

<mosaic_0001>
module attributes {stable_mosaic.version = 11 : i64} {
  func.func @_clone_classifier_kernel(%arg0: i32, %arg1: memref<128x32xf32, #tpu.memory_space<vmem>>, %arg2: memref<128x32xf32, #tpu.memory_space<vmem>>, %arg3: memref<64x512xf32, #tpu.memory_space<vmem>>, %arg4: memref<8x512xf32, #tpu.memory_space<vmem>>, %arg5: memref<1x128xf32, #tpu.memory_space<vmem>>) attributes {dimension_semantics = [#tpu.dimension_semantics<parallel>], iteration_bounds = array<i64: 1>, scalar_prefetch = 0 : i64, scratch_operands = 0 : i64, tpu.core_type = #tpu.core_type<tc>, window_params = [{transform_indices = @transform_0, window_bounds = array<i64: 128, 32>}, {transform_indices = @transform_1, window_bounds = array<i64: 128, 32>}, {pipeline_mode = #tpu.pipeline_mode<synchronous>, transform_indices = @transform_2, window_bounds = array<i64: 64, 512>}, {pipeline_mode = #tpu.pipeline_mode<synchronous>, transform_indices = @transform_3, window_bounds = array<i64: 8, 512>}, {transform_indices = @transform_4, window_bounds = array<i64: 1, 128>}]} {
    %c0 = arith.constant 0 : index
    %c0_0 = arith.constant 0 : index
    %0 = vector.load %arg1[%c0, %c0_0] : memref<128x32xf32, #tpu.memory_space<vmem>>, vector<128x32xf32>
    %c0_1 = arith.constant 0 : index
    %c0_2 = arith.constant 0 : index
    %1 = vector.load %arg2[%c0_1, %c0_2] : memref<128x32xf32, #tpu.memory_space<vmem>>, vector<128x32xf32>
    %2 = tpu.concatenate %0, %1 in 1 : vector<128x32xf32>, vector<128x32xf32> -> vector<128x64xf32>
    %c0_3 = arith.constant 0 : index
    %c0_4 = arith.constant 0 : index
    %3 = vector.load %arg3[%c0_3, %c0_4] : memref<64x512xf32, #tpu.memory_space<vmem>>, vector<64x512xf32>
    %cst = arith.constant dense<0.000000e+00> : vector<128x512xf32>
    %4 = tpu.matmul %2, %3, %cst {dimension_numbers = #tpu.dot_dimension_numbers<[1], [0], [0], [1], [0, 0, 1, 1], [], []>} : vector<128x64xf32>, vector<64x512xf32>, vector<128x512xf32> -> vector<128x512xf32>
    %c0_5 = arith.constant 0 : index
    %c0_6 = arith.constant 0 : index
    %5 = vector.load %arg4[%c0_5, %c0_6] : memref<8x512xf32, #tpu.memory_space<vmem>>, vector<8x512xf32>
    %6 = vector.extract_strided_slice %5 {offsets = [0, 0], sizes = [1, 512], strides = [1, 1]} : vector<8x512xf32> to vector<1x512xf32>
    %7 = vector.broadcast %6 : vector<1x512xf32> to vector<128x512xf32>
    %8 = arith.addf %4, %7 : vector<128x512xf32>
    %cst_7 = arith.constant 0.000000e+00 : f32
    %9 = vector.broadcast %cst_7 : f32 to vector<128x512xf32>
    %10 = arith.maximumf %8, %9 : vector<128x512xf32>
    %cst_8 = arith.constant dense<0.000000e+00> : vector<8x128xf32>
    %11 = tpu.matmul %5, %10, %cst_8 {dimension_numbers = #tpu.dot_dimension_numbers<[1], [1], [0], [0], [0, 0, 1, 0], [], []>} : vector<8x512xf32>, vector<128x512xf32>, vector<8x128xf32> -> vector<8x128xf32>
    %12 = vector.extract_strided_slice %11 {offsets = [1, 0], sizes = [1, 128], strides = [1, 1]} : vector<8x128xf32> to vector<1x128xf32>
    %c0_9 = arith.constant 0 : index
    %c0_10 = arith.constant 0 : index
    %13 = vector.load %arg5[%c0_9, %c0_10] : memref<1x128xf32, #tpu.memory_space<vmem>>, vector<1x128xf32>
    tpu.vector_store %arg5[%c0_9, %c0_10], %12 {strides = array<i32>} : memref<1x128xf32, #tpu.memory_space<vmem>>, vector<1x128xf32>,
    return
  }
  func.func @transform_0(%arg0: i32) -> (i32, i32) {
    %c0_i32 = arith.constant 0 : i32
    %c0_i32_0 = arith.constant 0 : i32
    return %arg0, %c0_i32 : i32, i32
  }
  func.func @transform_1(%arg0: i32) -> (i32, i32) {
    %c0_i32 = arith.constant 0 : i32
    %c0_i32_0 = arith.constant 0 : i32
    return %arg0, %c0_i32 : i32, i32
  }
  func.func @transform_2(%arg0: i32) -> (i32, i32) {
    %c0_i32 = arith.constant 0 : i32
    %c0_i32_0 = arith.constant 0 : i32
    %c0_i32_1 = arith.constant 0 : i32
    return %c0_i32, %c0_i32_0 : i32, i32
  }
  func.func @transform_3(%arg0: i32) -> (i32, i32) {
    %c0_i32 = arith.constant 0 : i32
    %c0_i32_0 = arith.constant 0 : i32
    %c0_i32_1 = arith.constant 0 : i32
    return %c0_i32, %c0_i32_0 : i32, i32
  }
  func.func @transform_4(%arg0: i32) -> (i32, i32) {
    %c0_i32 = arith.constant 0 : i32
    %c0_i32_0 = arith.constant 0 : i32
    return %c0_i32, %arg0 : i32, i32
  }
}

</mosaic_0001>

<llo_original>
// kernel: clone_classifier.1
$region0: #{clone_classifier.1}
  #allocation0 [shape = 'u32[]', space=smem, size = 0x4, offset = 0x4, fixed_abs, tag = 'smem constant byte address 0x4 - core index']
  #allocation1 [shape = 'u32[72,128]{1,0:T(1,128)}', space=vmem, size = 0x9000, scoped, tag = 'internal scratch']
  %s0 = inlined_call_operand.vmem [shape: f32[2,32], index: 0, kind: input, shape index: {}]
  %s1 = inlined_call_operand.vmem [shape: f32[2,32], index: 1, kind: input, shape index: {}]
  %s2 = inlined_call_operand.hbm [shape: f32[64,512], index: 2, kind: input, shape index: {}]
  %s3 = inlined_call_operand.vmem [shape: f32[8,512], index: 3, kind: input, shape index: {}]
  %s4 = inlined_call_operand.vmem [shape: f32[1,128], index: 4, kind: output, shape index: {}]
  %s5 = sld [smem:[#allocation0]]
  $region30: #{clone_classifier.1} parent=0
    _
  %s7 = ssub.s32 1, %s5
  %s8 = scalar_select 0, %s7, %s5
  $region1: #{clone_classifier.1} parent=0
    #allocation2 [shape = 'u8[131072]{0}', space=vmem, size = 0x20000, scoped, tag = 'input window, operand 2, single buffered']
    #allocation3 [shape = 's32[1]{0}', space=sflag, size = 0x4, scoped, tag = 'scoped memory for clone_classifier.1']
    %9 = vsyncpa [#allocation3], 0
    // Predicated region
    $region2: #{clone_classifier.1} parent=1 // pred_check
      _
    $region3: #{clone_classifier.1} parent=1 // pred_check_branch
      %11 = sbr.rel (0) target = $region5
    $region4: #{clone_classifier.1} parent=1 // pred_region
      _
    $region5: #{clone_classifier.1} parent=1 // pred_fallthru
      _
    // Predicated region
    $region6: #{clone_classifier.1} parent=1 // pred_check
      _
    $region7: #{clone_classifier.1} parent=1 // pred_check_branch
      %13 = sbr.rel (0) target = $region9
    $region8: #{clone_classifier.1} parent=1 // pred_region
      _
    $region9: #{clone_classifier.1} parent=1 // pred_fallthru
      _
    // Predicated region
    $region10: #{clone_classifier.1} parent=1 // pred_check
      _
    $region11: #{clone_classifier.1} parent=1 // pred_check_branch
      %15 = sbr.rel (0) target = $region13
    $region12: #{clone_classifier.1} parent=1 // pred_region
      %17 = vsyncadd [#allocation3], 0
      %s18 = sshll.u32 %s2, 4
      %s19 = int_to_ptr.hbm [resolvable:$true] %s18
      %s20 = sshll.u32 [#allocation2], 4
      %s21 = int_to_ptr.vmem [resolvable:$true] %s20
      %26 = dma.hbm_to_vmem [thread:$0]  %s19, 4096, %s21, [#allocation3], 512, 512, 32
    $region13: #{clone_classifier.1} parent=1 // pred_fallthru
      _
    // Predicated region
    $region14: #{clone_classifier.1} parent=1 // pred_check
      _
    $region15: #{clone_classifier.1} parent=1 // pred_check_branch
      %28 = sbr.rel (0) target = $region17
    $region16: #{clone_classifier.1} parent=1 // pred_region
      _
    $region17: #{clone_classifier.1} parent=1 // pred_fallthru
      _
    // Predicated region
    $region18: #{clone_classifier.1} parent=1 // pred_check
      _
    $region19: #{clone_classifier.1} parent=1 // pred_check_branch
      %30 = sbr.rel (0) target = $region21
    $region20: #{clone_classifier.1} parent=1 // pred_region
      %32 = dma.done [#allocation3], 4096
    $region21: #{clone_classifier.1} parent=1 // pred_fallthru
      _
    %v33 = vld [vmem:[%s0] sm:$0xff]
    %v34 = vld [vmem:[%s0 + $0x8] sm:$0xff]
    %v35 = vld [vmem:[%s0 + $0x10] sm:$0xff]
    %v36 = vld [vmem:[%s0 + $0x18] sm:$0xff]
    %v37 = vld [vmem:[%s0 + $0x20] sm:$0xff]
    %v38 = vld [vmem:[%s0 + $0x28] sm:$0xff]
    %v39 = vld [vmem:[%s0 + $0x30] sm:$0xff]
    %v40 = vld [vmem:[%s0 + $0x38] sm:$0xff]
    %v41 = vld [vmem:[%s0 + $0x40] sm:$0xff]
    %v42 = vld [vmem:[%s0 + $0x48] sm:$0xff]
    %v43 = vld [vmem:[%s0 + $0x50] sm:$0xff]
    %v44 = vld [vmem:[%s0 + $0x58] sm:$0xff]
    %v45 = vld [vmem:[%s0 + $0x60] sm:$0xff]
    %v46 = vld [vmem:[%s0 + $0x68] sm:$0xff]
    %v47 = vld [vmem:[%s0 + $0x70] sm:$0xff]
    %v48 = vld [vmem:[%s0 + $0x78] sm:$0xff]
    %v49 = vld [vmem:[%s1] sm:$0xff]
    %v50 = vld [vmem:[%s1 + $0x8] sm:$0xff]
    %v51 = vld [vmem:[%s1 + $0x10] sm:$0xff]
    %v52 = vld [vmem:[%s1 + $0x18] sm:$0xff]
    %v53 = vld [vmem:[%s1 + $0x20] sm:$0xff]
    %v54 = vld [vmem:[%s1 + $0x28] sm:$0xff]
    %v55 = vld [vmem:[%s1 + $0x30] sm:$0xff]
    %v56 = vld [vmem:[%s1 + $0x38] sm:$0xff]
    %v57 = vld [vmem:[%s1 + $0x40] sm:$0xff]
    %v58 = vld [vmem:[%s1 + $0x48] sm:$0xff]
    %v59 = vld [vmem:[%s1 + $0x50] sm:$0xff]
    %v60 = vld [vmem:[%s1 + $0x58] sm:$0xff]
    %v61 = vld [vmem:[%s1 + $0x60] sm:$0xff]
    %v62 = vld [vmem:[%s1 + $0x68] sm:$0xff]
    %v63 = vld [vmem:[%s1 + $0x70] sm:$0xff]
    %v64 = vld [vmem:[%s1 + $0x78] sm:$0xff]
    %81 = vrot.lane.b32.xlu0 %v49, 32
    %v82 = vpop.permute.xlu0 %81
    %83 = vrot.lane.b32.xlu0 %v50, 32
    %v84 = vpop.permute.xlu0 %83
    %85 = vrot.lane.b32.xlu0 %v51, 32
    %v86 = vpop.permute.xlu0 %85
    %87 = vrot.lane.b32.xlu0 %v52, 32
    %v88 = vpop.permute.xlu0 %87
    %89 = vrot.lane.b32.xlu0 %v53, 32
    %v90 = vpop.permute.xlu0 %89
    %91 = vrot.lane.b32.xlu0 %v54, 32
    %v92 = vpop.permute.xlu0 %91
    %93 = vrot.lane.b32.xlu0 %v55, 32
    %v94 = vpop.permute.xlu0 %93
    %95 = vrot.lane.b32.xlu0 %v56, 32
    %v96 = vpop.permute.xlu0 %95
    %97 = vrot.lane.b32.xlu0 %v57, 32
    %v98 = vpop.permute.xlu0 %97
    %99 = vrot.lane.b32.xlu0 %v58, 32
    %v100 = vpop.permute.xlu0 %99
    %101 = vrot.lane.b32.xlu0 %v59, 32
    %v102 = vpop.permute.xlu0 %101
    %103 = vrot.lane.b32.xlu0 %v60, 32
    %v104 = vpop.permute.xlu0 %103
    %105 = vrot.lane.b32.xlu0 %v61, 32
    %v106 = vpop.permute.xlu0 %105
    %107 = vrot.lane.b32.xlu0 %v62, 32
    %v108 = vpop.permute.xlu0 %107
    %109 = vrot.lane.b32.xlu0 %v63, 32
    %v110 = vpop.permute.xlu0 %109
    %111 = vrot.lane.b32.xlu0 %v64, 32
    %v112 = vpop.permute.xlu0 %111
    %vm129 = vcmask 261120
    %v130 = vsel %vm129, %v33, %v82
    %v131 = vsel %vm129, %v34, %v84
    %v132 = vsel %vm129, %v35, %v86
    %v133 = vsel %vm129, %v36, %v88
    %v134 = vsel %vm129, %v37, %v90
    %v135 = vsel %vm129, %v38, %v92
    %v136 = vsel %vm129, %v39, %v94
    %v137 = vsel %vm129, %v40, %v96
    %v138 = vsel %vm129, %v41, %v98
    %v139 = vsel %vm129, %v42, %v100
    %v140 = vsel %vm129, %v43, %v102
    %v141 = vsel %vm129, %v44, %v104
    %v142 = vsel %vm129, %v45, %v106
    %v143 = vsel %vm129, %v46, %v108
    %v144 = vsel %vm129, %v47, %v110
    %v145 = vsel %vm129, %v48, %v112
    %v146 = vld [vmem:[#allocation2] sm:$0xff]
    %v147 = vld [vmem:[#allocation2 + $0x8] sm:$0xff]
    %v148 = vld [vmem:[#allocation2 + $0x10] sm:$0xff]
    %v149 = vld [vmem:[#allocation2 + $0x18] sm:$0xff]
    %v150 = vld [vmem:[#allocation2 + $0x20] sm:$0xff]
    %v151 = vld [vmem:[#allocation2 + $0x28] sm:$0xff]
    %v152 = vld [vmem:[#allocation2 + $0x30] sm:$0xff]
    %v153 = vld [vmem:[#allocation2 + $0x38] sm:$0xff]
    %v154 = vld [vmem:[#allocation2 + $0x40] sm:$0xff]
    %v155 = vld [vmem:[#allocation2 + $0x48] sm:$0xff]
    %v156 = vld [vmem:[#allocation2 + $0x50] sm:$0xff]
    %v157 = vld [vmem:[#allocation2 + $0x58] sm:$0xff]
    %v158 = vld [vmem:[#allocation2 + $0x60] sm:$0xff]
    %v159 = vld [vmem:[#allocation2 + $0x68] sm:$0xff]
    %v160 = vld [vmem:[#allocation2 + $0x70] sm:$0xff]
    %v161 = vld [vmem:[#allocation2 + $0x78] sm:$0xff]
    %v162 = vld [vmem:[#allocation2 + $0x80] sm:$0xff]
    %v163 = vld [vmem:[#allocation2 + $0x88] sm:$0xff]
    %v164 = vld [vmem:[#allocation2 + $0x90] sm:$0xff]
    %v165 = vld [vmem:[#allocation2 + $0x98] sm:$0xff]
    %v166 = vld [vmem:[#allocation2 + $0xa0] sm:$0xff]
    %v167 = vld [vmem:[#allocation2 + $0xa8] sm:$0xff]
    %v168 = vld [vmem:[#allocation2 + $0xb0] sm:$0xff]
    %v169 = vld [vmem:[#allocation2 + $0xb8] sm:$0xff]
    %v170 = vld [vmem:[#allocation2 + $0xc0] sm:$0xff]
    %v171 = vld [vmem:[#allocation2 + $0xc8] sm:$0xff]
    %v172 = vld [vmem:[#allocation2 + $0xd0] sm:$0xff]
    %v173 = vld [vmem:[#allocation2 + $0xd8] sm:$0xff]
    %v174 = vld [vmem:[#allocation2 + $0xe0] sm:$0xff]
    %v175 = vld [vmem:[#allocation2 + $0xe8] sm:$0xff]
    %v176 = vld [vmem:[#allocation2 + $0xf0] sm:$0xff]
    %v177 = vld [vmem:[#allocation2 + $0xf8] sm:$0xff]
    %v178 = vld [vmem:[%s3] sm:$0xff]
    %v179 = vld [vmem:[%s3 + $0x8] sm:$0xff]
    %v180 = vld [vmem:[%s3 + $0x10] sm:$0xff]
    %v181 = vld [vmem:[%s3 + $0x18] sm:$0xff]
    %v182 = vperm.slane %v178, 0
    %v183 = vperm.slane %v179, 0
    %v184 = vperm.slane %v180, 0
    %v185 = vperm.slane %v181, 0
    %vm186 = vcmask 523264
    %v188 = vsel %vm186, %v130, 0
    %v191 = vsel %vm186, %v131, 0
    %v194 = vsel %vm186, %v132, 0
    %v197 = vsel %vm186, %v133, 0
    %v200 = vsel %vm186, %v134, 0
    %v203 = vsel %vm186, %v135, 0
    %v206 = vsel %vm186, %v136, 0
    %v209 = vsel %vm186, %v137, 0
    %v212 = vsel %vm186, %v138, 0
    %v215 = vsel %vm186, %v139, 0
    %v218 = vsel %vm186, %v140, 0
    %v221 = vsel %vm186, %v141, 0
    %v224 = vsel %vm186, %v142, 0
    %v227 = vsel %vm186, %v143, 0
    %v230 = vsel %vm186, %v144, 0
    %v233 = vsel %vm186, %v145, 0
    %235 = vmatpush.msra.mxu0 0.0
    %236 = vmatpush.msra.mxu0 0.0
    %237 = vmatpush.msra.mxu0 0.0
    %238 = vmatpush.msra.mxu0 0.0
    %239 = vmatpush.msra.mxu0 0.0
    %240 = vmatpush.msra.mxu0 0.0
    %241 = vmatpush.msra.mxu0 0.0
    %242 = vmatpush.msra.mxu0 0.0
    %243 = vmatpush.msra.mxu0 %v174
    %244 = vmatpush.msra.mxu0 %v170
    %245 = vmatpush.msra.mxu0 %v166
    %246 = vmatpush.msra.mxu0 %v162
    %247 = vmatpush.msra.mxu0 %v158
    %248 = vmatpush.msra.mxu0 %v154
    %249 = vmatpush.msra.mxu0 %v150
    %250 = vmatpush.msra.mxu0 %v146
    %251 = vmatmul.f32.gmra.mxu0 %v188
    %v252 = vpop.f32.mrf.mxu0
    %v253 = vadd.f32 %v182, %v252
    %254 = vmatmul.f32.gmra.mxu0 %v191
    %v255 = vpop.f32.mrf.mxu0
    %v256 = vadd.f32 %v182, %v255
    %257 = vmatmul.f32.gmra.mxu0 %v194
    %v258 = vpop.f32.mrf.mxu0
    %v259 = vadd.f32 %v182, %v258
    %260 = vmatmul.f32.gmra.mxu0 %v197
    %v261 = vpop.f32.mrf.mxu0
    %v262 = vadd.f32 %v182, %v261
    %263 = vmatmul.f32.gmra.mxu0 %v200
    %v264 = vpop.f32.mrf.mxu0
    %v265 = vadd.f32 %v182, %v264
    %266 = vmatmul.f32.gmra.mxu0 %v203
    %v267 = vpop.f32.mrf.mxu0
    %v268 = vadd.f32 %v182, %v267
    %269 = vmatmul.f32.gmra.mxu0 %v206
    %v270 = vpop.f32.mrf.mxu0
    %v271 = vadd.f32 %v182, %v270
    %272 = vmatmul.f32.gmra.mxu0 %v209
    %v273 = vpop.f32.mrf.mxu0
    %v274 = vadd.f32 %v182, %v273
    %275 = vmatmul.f32.gmra.mxu0 %v212
    %v276 = vpop.f32.mrf.mxu0
    %v277 = vadd.f32 %v182, %v276
    %278 = vmatmul.f32.gmra.mxu0 %v215
    %v279 = vpop.f32.mrf.mxu0
    %v280 = vadd.f32 %v182, %v279
    %281 = vmatmul.f32.gmra.mxu0 %v218
    %v282 = vpop.f32.mrf.mxu0
    %v283 = vadd.f32 %v182, %v282
    %284 = vmatmul.f32.gmra.mxu0 %v221
    %v285 = vpop.f32.mrf.mxu0
    %v286 = vadd.f32 %v182, %v285
    %287 = vmatmul.f32.gmra.mxu0 %v224
    %v288 = vpop.f32.mrf.mxu0
    %v289 = vadd.f32 %v182, %v288
    %290 = vmatmul.f32.gmra.mxu0 %v227
    %v291 = vpop.f32.mrf.mxu0
    %v292 = vadd.f32 %v182, %v291
    %293 = vmatmul.f32.gmra.mxu0 %v230
    %v294 = vpop.f32.mrf.mxu0
    %v295 = vadd.f32 %v182, %v294
    %296 = vmatmul.f32.gmra.mxu0 %v233
    %v297 = vpop.f32.mrf.mxu0
    %v298 = vadd.f32 %v182, %v297
    %299 = vdwg.mxu0
    %300 = vmatpush.msra.mxu0 0.0
    %301 = vmatpush.msra.mxu0 0.0
    %302 = vmatpush.msra.mxu0 0.0
    %303 = vmatpush.msra.mxu0 0.0
    %304 = vmatpush.msra.mxu0 0.0
    %305 = vmatpush.msra.mxu0 0.0
    %306 = vmatpush.msra.mxu0 0.0
    %307 = vmatpush.msra.mxu0 0.0
    %308 = vmatpush.msra.mxu0 %v175
    %309 = vmatpush.msra.mxu0 %v171
    %310 = vmatpush.msra.mxu0 %v167
    %311 = vmatpush.msra.mxu0 %v163
    %312 = vmatpush.msra.mxu0 %v159
    %313 = vmatpush.msra.mxu0 %v155
    %314 = vmatpush.msra.mxu0 %v151
    %315 = vmatpush.msra.mxu0 %v147
    %316 = vmatmul.f32.gmra.mxu0 %v188
    %v317 = vpop.f32.mrf.mxu0
    %v318 = vadd.f32 %v183, %v317
    %319 = vmatmul.f32.gmra.mxu0 %v191
    %v320 = vpop.f32.mrf.mxu0
    %v321 = vadd.f32 %v183, %v320
    %322 = vmatmul.f32.gmra.mxu0 %v194
    %v323 = vpop.f32.mrf.mxu0
    %v324 = vadd.f32 %v183, %v323
    %325 = vmatmul.f32.gmra.mxu0 %v197
    %v326 = vpop.f32.mrf.mxu0
    %v327 = vadd.f32 %v183, %v326
    %328 = vmatmul.f32.gmra.mxu0 %v200
    %v329 = vpop.f32.mrf.mxu0
    %v330 = vadd.f32 %v183, %v329
    %331 = vmatmul.f32.gmra.mxu0 %v203
    %v332 = vpop.f32.mrf.mxu0
    %v333 = vadd.f32 %v183, %v332
    %334 = vmatmul.f32.gmra.mxu0 %v206
    %v335 = vpop.f32.mrf.mxu0
    %v336 = vadd.f32 %v183, %v335
    %337 = vmatmul.f32.gmra.mxu0 %v209
    %v338 = vpop.f32.mrf.mxu0
    %v339 = vadd.f32 %v183, %v338
    %340 = vmatmul.f32.gmra.mxu0 %v212
    %v341 = vpop.f32.mrf.mxu0
    %v342 = vadd.f32 %v183, %v341
    %343 = vmatmul.f32.gmra.mxu0 %v215
    %v344 = vpop.f32.mrf.mxu0
    %v345 = vadd.f32 %v183, %v344
    %346 = vmatmul.f32.gmra.mxu0 %v218
    %v347 = vpop.f32.mrf.mxu0
    %v348 = vadd.f32 %v183, %v347
    %349 = vmatmul.f32.gmra.mxu0 %v221
    %v350 = vpop.f32.mrf.mxu0
    %v351 = vadd.f32 %v183, %v350
    %352 = vmatmul.f32.gmra.mxu0 %v224
    %v353 = vpop.f32.mrf.mxu0
    %v354 = vadd.f32 %v183, %v353
    %355 = vmatmul.f32.gmra.mxu0 %v227
    %v356 = vpop.f32.mrf.mxu0
    %v357 = vadd.f32 %v183, %v356
    %358 = vmatmul.f32.gmra.mxu0 %v230
    %v359 = vpop.f32.mrf.mxu0
    %v360 = vadd.f32 %v183, %v359
    %361 = vmatmul.f32.gmra.mxu0 %v233
    %v362 = vpop.f32.mrf.mxu0
    %v363 = vadd.f32 %v183, %v362
    %364 = vdwg.mxu0
    %365 = vmatpush.msra.mxu0 0.0
    %366 = vmatpush.msra.mxu0 0.0
    %367 = vmatpush.msra.mxu0 0.0
    %368 = vmatpush.msra.mxu0 0.0
    %369 = vmatpush.msra.mxu0 0.0
    %370 = vmatpush.msra.mxu0 0.0
    %371 = vmatpush.msra.mxu0 0.0
    %372 = vmatpush.msra.mxu0 0.0
    %373 = vmatpush.msra.mxu0 %v176
    %374 = vmatpush.msra.mxu0 %v172
    %375 = vmatpush.msra.mxu0 %v168
    %376 = vmatpush.msra.mxu0 %v164
    %377 = vmatpush.msra.mxu0 %v160
    %378 = vmatpush.msra.mxu0 %v156
    %379 = vmatpush.msra.mxu0 %v152
    %380 = vmatpush.msra.mxu0 %v148
    %381 = vmatmul.f32.gmra.mxu0 %v188
    %v382 = vpop.f32.mrf.mxu0
    %v383 = vadd.f32 %v184, %v382
    %384 = vmatmul.f32.gmra.mxu0 %v191
    %v385 = vpop.f32.mrf.mxu0
    %v386 = vadd.f32 %v184, %v385
    %387 = vmatmul.f32.gmra.mxu0 %v194
    %v388 = vpop.f32.mrf.mxu0
    %v389 = vadd.f32 %v184, %v388
    %390 = vmatmul.f32.gmra.mxu0 %v197
    %v391 = vpop.f32.mrf.mxu0
    %v392 = vadd.f32 %v184, %v391
    %393 = vmatmul.f32.gmra.mxu0 %v200
    %v394 = vpop.f32.mrf.mxu0
    %v395 = vadd.f32 %v184, %v394
    %396 = vmatmul.f32.gmra.mxu0 %v203
    %v397 = vpop.f32.mrf.mxu0
    %v398 = vadd.f32 %v184, %v397
    %399 = vmatmul.f32.gmra.mxu0 %v206
    %v400 = vpop.f32.mrf.mxu0
    %v401 = vadd.f32 %v184, %v400
    %402 = vmatmul.f32.gmra.mxu0 %v209
    %v403 = vpop.f32.mrf.mxu0
    %v404 = vadd.f32 %v184, %v403
    %405 = vmatmul.f32.gmra.mxu0 %v212
    %v406 = vpop.f32.mrf.mxu0
    %v407 = vadd.f32 %v184, %v406
    %408 = vmatmul.f32.gmra.mxu0 %v215
    %v409 = vpop.f32.mrf.mxu0
    %v410 = vadd.f32 %v184, %v409
    %411 = vmatmul.f32.gmra.mxu0 %v218
    %v412 = vpop.f32.mrf.mxu0
    %v413 = vadd.f32 %v184, %v412
    %414 = vmatmul.f32.gmra.mxu0 %v221
    %v415 = vpop.f32.mrf.mxu0
    %v416 = vadd.f32 %v184, %v415
    %417 = vmatmul.f32.gmra.mxu0 %v224
    %v418 = vpop.f32.mrf.mxu0
    %v419 = vadd.f32 %v184, %v418
    %420 = vmatmul.f32.gmra.mxu0 %v227
    %v421 = vpop.f32.mrf.mxu0
    %v422 = vadd.f32 %v184, %v421
    %423 = vmatmul.f32.gmra.mxu0 %v230
    %v424 = vpop.f32.mrf.mxu0
    %v425 = vadd.f32 %v184, %v424
    %426 = vmatmul.f32.gmra.mxu0 %v233
    %v427 = vpop.f32.mrf.mxu0
    %v428 = vadd.f32 %v184, %v427
    %429 = vdwg.mxu0
    %430 = vmatpush.msra.mxu0 0.0
    %431 = vmatpush.msra.mxu0 0.0
    %432 = vmatpush.msra.mxu0 0.0
    %433 = vmatpush.msra.mxu0 0.0
    %434 = vmatpush.msra.mxu0 0.0
    %435 = vmatpush.msra.mxu0 0.0
    %436 = vmatpush.msra.mxu0 0.0
    %437 = vmatpush.msra.mxu0 0.0
    %438 = vmatpush.msra.mxu0 %v177
    %439 = vmatpush.msra.mxu0 %v173
    %440 = vmatpush.msra.mxu0 %v169
    %441 = vmatpush.msra.mxu0 %v165
    %442 = vmatpush.msra.mxu0 %v161
    %443 = vmatpush.msra.mxu0 %v157
    %444 = vmatpush.msra.mxu0 %v153
    %445 = vmatpush.msra.mxu0 %v149
    %446 = vmatmul.f32.gmra.mxu0 %v188
    %v447 = vpop.f32.mrf.mxu0
    %v448 = vadd.f32 %v185, %v447
    %449 = vmatmul.f32.gmra.mxu0 %v191
    %v450 = vpop.f32.mrf.mxu0
    %v451 = vadd.f32 %v185, %v450
    %452 = vmatmul.f32.gmra.mxu0 %v194
    %v453 = vpop.f32.mrf.mxu0
    %v454 = vadd.f32 %v185, %v453
    %455 = vmatmul.f32.gmra.mxu0 %v197
    %v456 = vpop.f32.mrf.mxu0
    %v457 = vadd.f32 %v185, %v456
    %458 = vmatmul.f32.gmra.mxu0 %v200
    %v459 = vpop.f32.mrf.mxu0
    %v460 = vadd.f32 %v185, %v459
    %461 = vmatmul.f32.gmra.mxu0 %v203
    %v462 = vpop.f32.mrf.mxu0
    %v463 = vadd.f32 %v185, %v462
    %464 = vmatmul.f32.gmra.mxu0 %v206
    %v465 = vpop.f32.mrf.mxu0
    %v466 = vadd.f32 %v185, %v465
    %467 = vmatmul.f32.gmra.mxu0 %v209
    %v468 = vpop.f32.mrf.mxu0
    %v469 = vadd.f32 %v185, %v468
    %470 = vmatmul.f32.gmra.mxu0 %v212
    %v471 = vpop.f32.mrf.mxu0
    %v472 = vadd.f32 %v185, %v471
    %473 = vmatmul.f32.gmra.mxu0 %v215
    %v474 = vpop.f32.mrf.mxu0
    %v475 = vadd.f32 %v185, %v474
    %476 = vmatmul.f32.gmra.mxu0 %v218
    %v477 = vpop.f32.mrf.mxu0
    %v478 = vadd.f32 %v185, %v477
    %479 = vmatmul.f32.gmra.mxu0 %v221
    %v480 = vpop.f32.mrf.mxu0
    %v481 = vadd.f32 %v185, %v480
    %482 = vmatmul.f32.gmra.mxu0 %v224
    %v483 = vpop.f32.mrf.mxu0
    %v484 = vadd.f32 %v185, %v483
    %485 = vmatmul.f32.gmra.mxu0 %v227
    %v486 = vpop.f32.mrf.mxu0
    %v487 = vadd.f32 %v185, %v486
    %488 = vmatmul.f32.gmra.mxu0 %v230
    %v489 = vpop.f32.mrf.mxu0
    %v490 = vadd.f32 %v185, %v489
    %491 = vmatmul.f32.gmra.mxu0 %v233
    %v492 = vpop.f32.mrf.mxu0
    %v493 = vadd.f32 %v185, %v492
    %494 = vdwg.mxu0
    %v495 = vmax.f32 %v253, 0.0
    %v496 = vmax.f32 %v318, 0.0
    %v497 = vmax.f32 %v383, 0.0
    %v498 = vmax.f32 %v448, 0.0
    %v499 = vmax.f32 %v256, 0.0
    %v500 = vmax.f32 %v321, 0.0
    %v501 = vmax.f32 %v386, 0.0
    %v502 = vmax.f32 %v451, 0.0
    %v503 = vmax.f32 %v259, 0.0
    %v504 = vmax.f32 %v324, 0.0
    %v505 = vmax.f32 %v389, 0.0
    %v506 = vmax.f32 %v454, 0.0
    %v507 = vmax.f32 %v262, 0.0
    %v508 = vmax.f32 %v327, 0.0
    %v509 = vmax.f32 %v392, 0.0
    %v510 = vmax.f32 %v457, 0.0
    %v511 = vmax.f32 %v265, 0.0
    %v512 = vmax.f32 %v330, 0.0
    %v513 = vmax.f32 %v395, 0.0
    %v514 = vmax.f32 %v460, 0.0
    %v515 = vmax.f32 %v268, 0.0
    %v516 = vmax.f32 %v333, 0.0
    %v517 = vmax.f32 %v398, 0.0
    %v518 = vmax.f32 %v463, 0.0
    %v519 = vmax.f32 %v271, 0.0
    %v520 = vmax.f32 %v336, 0.0
    %v521 = vmax.f32 %v401, 0.0
    %v522 = vmax.f32 %v466, 0.0
    %v523 = vmax.f32 %v274, 0.0
    %v524 = vmax.f32 %v339, 0.0
    %v525 = vmax.f32 %v404, 0.0
    %v526 = vmax.f32 %v469, 0.0
    %v527 = vmax.f32 %v277, 0.0
    %v528 = vmax.f32 %v342, 0.0
    %v529 = vmax.f32 %v407, 0.0
    %v530 = vmax.f32 %v472, 0.0
    %v531 = vmax.f32 %v280, 0.0
    %v532 = vmax.f32 %v345, 0.0
    %v533 = vmax.f32 %v410, 0.0
    %v534 = vmax.f32 %v475, 0.0
    %v535 = vmax.f32 %v283, 0.0
    %v536 = vmax.f32 %v348, 0.0
    %v537 = vmax.f32 %v413, 0.0
    %v538 = vmax.f32 %v478, 0.0
    %v539 = vmax.f32 %v286, 0.0
    %v540 = vmax.f32 %v351, 0.0
    %v541 = vmax.f32 %v416, 0.0
    %v542 = vmax.f32 %v481, 0.0
    %v543 = vmax.f32 %v289, 0.0
    %v544 = vmax.f32 %v354, 0.0
    %v545 = vmax.f32 %v419, 0.0
    %v546 = vmax.f32 %v484, 0.0
    %v547 = vmax.f32 %v292, 0.0
    %v548 = vmax.f32 %v357, 0.0
    %v549 = vmax.f32 %v422, 0.0
    %v550 = vmax.f32 %v487, 0.0
    %v551 = vmax.f32 %v295, 0.0
    %v552 = vmax.f32 %v360, 0.0
    %v553 = vmax.f32 %v425, 0.0
    %v554 = vmax.f32 %v490, 0.0
    %v555 = vmax.f32 %v298, 0.0
    %v556 = vmax.f32 %v363, 0.0
    %v557 = vmax.f32 %v428, 0.0
    %v558 = vmax.f32 %v493, 0.0
    %559 = vmatpush.xpose.msra.mxu0 %v555
    %560 = vmatpush.xpose.msra.mxu0 %v551
    %561 = vmatpush.xpose.msra.mxu0 %v547
    %562 = vmatpush.xpose.msra.mxu0 %v543
    %563 = vmatpush.xpose.msra.mxu0 %v539
    %564 = vmatpush.xpose.msra.mxu0 %v535
    %565 = vmatpush.xpose.msra.mxu0 %v531
    %566 = vmatpush.xpose.msra.mxu0 %v527
    %567 = vmatpush.xpose.msra.mxu0 %v523
    %568 = vmatpush.xpose.msra.mxu0 %v519
    %569 = vmatpush.xpose.msra.mxu0 %v515
    %570 = vmatpush.xpose.msra.mxu0 %v511
    %571 = vmatpush.xpose.msra.mxu0 %v507
    %572 = vmatpush.xpose.msra.mxu0 %v503
    %573 = vmatpush.xpose.msra.mxu0 %v499
    %574 = vmatpush.xpose.msra.mxu0 %v495
    %575 = vmatmul.f32.gmra.mxu0 %v178
    %v576 = vpop.f32.mrf.mxu0
    %v577 = vadd.f32 0.0, %v576
    %578 = vdwg.mxu0
    %579 = vmatpush.xpose.msra.mxu0 %v556
    %580 = vmatpush.xpose.msra.mxu0 %v552
    %581 = vmatpush.xpose.msra.mxu0 %v548
    %582 = vmatpush.xpose.msra.mxu0 %v544
    %583 = vmatpush.xpose.msra.mxu0 %v540
    %584 = vmatpush.xpose.msra.mxu0 %v536
    %585 = vmatpush.xpose.msra.mxu0 %v532
    %586 = vmatpush.xpose.msra.mxu0 %v528
    %587 = vmatpush.xpose.msra.mxu0 %v524
    %588 = vmatpush.xpose.msra.mxu0 %v520
    %589 = vmatpush.xpose.msra.mxu0 %v516
    %590 = vmatpush.xpose.msra.mxu0 %v512
    %591 = vmatpush.xpose.msra.mxu0 %v508
    %592 = vmatpush.xpose.msra.mxu0 %v504
    %593 = vmatpush.xpose.msra.mxu0 %v500
    %594 = vmatpush.xpose.msra.mxu0 %v496
    %595 = vmatmul.f32.gmra.mxu0 %v179
    %v596 = vpop.f32.mrf.mxu0
    %v597 = vadd.f32 %v577, %v596
    %598 = vdwg.mxu0
    %599 = vmatpush.xpose.msra.mxu0 %v557
    %600 = vmatpush.xpose.msra.mxu0 %v553
    %601 = vmatpush.xpose.msra.mxu0 %v549
    %602 = vmatpush.xpose.msra.mxu0 %v545
    %603 = vmatpush.xpose.msra.mxu0 %v541
    %604 = vmatpush.xpose.msra.mxu0 %v537
    %605 = vmatpush.xpose.msra.mxu0 %v533
    %606 = vmatpush.xpose.msra.mxu0 %v529
    %607 = vmatpush.xpose.msra.mxu0 %v525
    %608 = vmatpush.xpose.msra.mxu0 %v521
    %609 = vmatpush.xpose.msra.mxu0 %v517
    %610 = vmatpush.xpose.msra.mxu0 %v513
    %611 = vmatpush.xpose.msra.mxu0 %v509
    %612 = vmatpush.xpose.msra.mxu0 %v505
    %613 = vmatpush.xpose.msra.mxu0 %v501
    %614 = vmatpush.xpose.msra.mxu0 %v497
    %615 = vmatmul.f32.gmra.mxu0 %v180
    %v616 = vpop.f32.mrf.mxu0
    %v617 = vadd.f32 %v597, %v616
    %618 = vdwg.mxu0
    %619 = vmatpush.xpose.msra.mxu0 %v558
    %620 = vmatpush.xpose.msra.mxu0 %v554
    %621 = vmatpush.xpose.msra.mxu0 %v550
    %622 = vmatpush.xpose.msra.mxu0 %v546
    %623 = vmatpush.xpose.msra.mxu0 %v542
    %624 = vmatpush.xpose.msra.mxu0 %v538
    %625 = vmatpush.xpose.msra.mxu0 %v534
    %626 = vmatpush.xpose.msra.mxu0 %v530
    %627 = vmatpush.xpose.msra.mxu0 %v526
    %628 = vmatpush.xpose.msra.mxu0 %v522
    %629 = vmatpush.xpose.msra.mxu0 %v518
    %630 = vmatpush.xpose.msra.mxu0 %v514
    %631 = vmatpush.xpose.msra.mxu0 %v510
    %632 = vmatpush.xpose.msra.mxu0 %v506
    %633 = vmatpush.xpose.msra.mxu0 %v502
    %634 = vmatpush.xpose.msra.mxu0 %v498
    %635 = vmatmul.f32.gmra.mxu0 %v181
    %v636 = vpop.f32.mrf.mxu0
    %v637 = vadd.f32 %v617, %v636
    %638 = vdwg.mxu0
    %639 = vst [vmem:[%s4 - $0x1] sm:$0x2] %v637
    // Predicated region
    $region22: #{clone_classifier.1} parent=1 // pred_check
      _
    $region23: #{clone_classifier.1} parent=1 // pred_check_branch
      %641 = sbr.rel (0) target = $region25
    $region24: #{clone_classifier.1} parent=1 // pred_region
      _
    $region25: #{clone_classifier.1} parent=1 // pred_fallthru
      _
    // Predicated region
    $region26: #{clone_classifier.1} parent=1 // pred_check
      _
    $region27: #{clone_classifier.1} parent=1 // pred_check_branch
      %643 = sbr.rel (0) target = $region29
    $region28: #{clone_classifier.1} parent=1 // pred_region
      _
    $region29: #{clone_classifier.1} parent=1 // pred_fallthru
      _
    %644 = vsyncpa [#allocation3], 1

</llo_original>
